<compile_context>
chip_gen: v7x
topology: tpu7x:2x2x1
jax: 0.10.0
libtpu: 0.0.40
codegen_flags: <defaults>
</compile_context>

<pallas_src>
import functools
import math

import jax
import jax.numpy as jnp
from jax.experimental import pallas as pl
from jax.experimental.pallas import tpu as pltpu


# -----------------------------------------------------------------------------
# Fused Pallas kernel: Conv2d(3x3, pad=1, no bias) -> PReLU -> Conv2d(1x1).
# One invocation processes the whole batch (B folded into the lane axis).
# -----------------------------------------------------------------------------
def _fused_odefunc_kernel(x_ref, w1_ref, w2_ref, a_ref, o_ref, *, B, WP, NWIDE):
    # x_ref : (B, Cpad, FLAT)   spatially padded input, rows flattened, Cin
    #                           zero-padded to a multiple of 8 sublanes
    # w1_ref: (Chid, 9*Cpad)    im2col 3x3 weights, column order (ky, kx, cin)
    # w2_ref: (Cout, Chid)      1x1 conv weights
    # a_ref : (1,) in SMEM      PReLU shared scalar parameter
    # o_ref : (B, Cout, NWIDE)  lane-dense "wide" output (NWIDE % 128 == 0)

    # Load each batch element's padded image once; taps are in-register lane
    # slices of it (offset ky*WP + kx).
    x_b = [x_ref[b] for b in range(B)]                       # each (Cpad, FLAT)

    taps = []
    for ky in range(3):
        for kx in range(3):
            shift = ky * WP + kx
            pieces = [xb[:, shift:shift + NWIDE] for xb in x_b]  # (Cpad, NWIDE)
            # Lane concat: each piece is a multiple of 128 lanes -> aligned.
            taps.append(pieces[0] if B == 1 else jnp.concatenate(pieces, axis=1))
    # Sublane concat: each tap is a full multiple of 8 sublanes -> aligned.
    patches = jnp.concatenate(taps, axis=0)                  # (9*Cpad, B*NWIDE)

    # conv1 (3x3) as ONE MXU matmul; channel-major => lane-dense result.
    h = jnp.dot(w1_ref[...], patches,
                preferred_element_type=jnp.float32)          # (Chid, B*NWIDE)

    # PReLU with a single shared parameter (nn.PReLU() default).
    alpha = a_ref[0]
    h = jnp.where(h > 0.0, h, alpha * h)

    # conv2 (1x1) as a second MXU matmul.
    out = jnp.dot(w2_ref[...], h,
                  preferred_element_type=jnp.float32)        # (Cout, B*NWIDE)

    # Per-batch lane-aligned stores (b*NWIDE is a multiple of 128).
    for b in range(B):
        o_ref[b, :, :] = out[:, b * NWIDE:(b + 1) * NWIDE].astype(o_ref.dtype)


# -----------------------------------------------------------------------------
# One-time parameter preprocessing (hoist out of the per-ODE-step call).
# -----------------------------------------------------------------------------
def prepare_conv_ode_params(params):
    """Precompute kernel-layout weights ONCE per ODE solve."""
    w1 = params["w1"].astype(jnp.float32)            # (Chid, Cin, 3, 3)
    Chid, C = w1.shape[0], w1.shape[1]
    Cout = params["w2"].shape[0]
    cpad = ((C + 7) // 8) * 8                        # pad Cin to sublane multiple
    # Zero-pad the input-channel axis; padded columns multiply padded (zero)
    # input channels, so they contribute nothing.
    w1p = jnp.pad(w1, ((0, 0), (0, cpad - C), (0, 0), (0, 0)))
    # (Chid, Cpad, 3, 3) -> columns ordered (ky, kx, cin) to match the kernel's
    # tap concatenation order.
    w1m = jnp.transpose(w1p, (0, 2, 3, 1)).reshape(Chid, 9 * cpad)
    w2m = params["w2"].reshape(Cout, Chid).astype(jnp.float32)
    alpha = params["prelu"].reshape(1).astype(jnp.float32)
    return {"w1m": w1m, "w2m": w2m, "alpha": alpha}


def _pick_wide_width(H, W):
    """Smallest padded row width WP >= W+2 such that H*WP is a multiple of 128."""
    step = 128 // math.gcd(H, 128)
    return ((W + 2 + step - 1) // step) * step


# -----------------------------------------------------------------------------
# Forward wrapper: ConvODEFunc.forward(t, x) with prepared params.
# -----------------------------------------------------------------------------
def conv_ode_func_forward(prep, t, x_nchw):
    """`t` is unused by the module's conv block; returns block(x)."""
    del t  # the conv block does not consume the ODE time variable
    B, C, H, W = x_nchw.shape
    w1m, w2m, alpha = prep["w1m"], prep["w2m"], prep["alpha"]
    Chid = w1m.shape[0]
    Cpad = w1m.shape[1] // 9
    Cout = w2m.shape[0]

    WP = _pick_wide_width(H, W)       # padded row width, H*WP % 128 == 0
    NWIDE = H * WP                    # lane-dense wide pixel grid
    FLAT = (H + 3) * WP               # 1 top + 2 bottom pad rows
    max_shift = 2 * WP + 2            # largest tap offset
    # Guard against a future H/W change silently reading past the padding.
    assert FLAT >= max_shift + NWIDE, (FLAT, max_shift, NWIDE)

    # Zero "same" padding (1 px top/left), extra bottom rows + right columns so
    # every tap lane-slice stays in bounds, channel pad to Cpad; flatten
    # spatial dims so each 3x3 tap is a contiguous lane-slice in the kernel.
    xpad = jnp.pad(x_nchw.astype(jnp.float32),
                   ((0, 0), (0, Cpad - C), (1, 2), (1, WP - W - 1)))
    xflat = xpad.reshape(B, Cpad, FLAT)

    kernel = functools.partial(_fused_odefunc_kernel, B=B, WP=WP, NWIDE=NWIDE)
    out_wide = pl.pallas_call(
        kernel,
        out_shape=jax.ShapeDtypeStruct((B, Cout, NWIDE), jnp.float32),
        grid=(1,),
        in_specs=[
            pl.BlockSpec((B, Cpad, FLAT), lambda i: (0, 0, 0)),
            pl.BlockSpec((Chid, 9 * Cpad), lambda i: (0, 0)),
            pl.BlockSpec((Cout, Chid), lambda i: (0, 0)),
            pl.BlockSpec(memory_space=pltpu.MemorySpace.SMEM),   # PReLU scalar
        ],
        out_specs=pl.BlockSpec((B, Cout, NWIDE), lambda i: (0, 0, 0)),
        compiler_params=pltpu.CompilerParams(
            dimension_semantics=("arbitrary",)),
    )(xflat, w1m, w2m, alpha)

    # Drop the garbage columns of each wide row; result is already NCHW.
    return out_wide.reshape(B, Cout, H, WP)[:, :, :, :W]


# -----------------------------------------------------------------------------
# Pure-JAX reference (lax.conv, NCHW) for correctness checking.
# -----------------------------------------------------------------------------
def _forward_ref(params, t, x_nchw):
    del t
    x = x_nchw.astype(jnp.float32)
    h = jax.lax.conv_general_dilated(
        x, params["w1"], window_strides=(1, 1), padding=((1, 1), (1, 1)),
        dimension_numbers=("NCHW", "OIHW", "NCHW"))
    a = params["prelu"].reshape(())
    h = jnp.where(h > 0.0, h, a * h)
    return jax.lax.conv_general_dilated(
        h, params["w2"], window_strides=(1, 1), padding=((0, 0), (0, 0)),
        dimension_numbers=("NCHW", "OIHW", "NCHW"))


if __name__ == "__main__":
    B, C, H, W = 2, 4, 16, 16
    HIDDEN = 32

    key = jax.random.PRNGKey(0)
    kx, kw1, kw2 = jax.random.split(key, 3)
    x = jax.random.normal(kx, (B, C, H, W), jnp.float32)
    params = {
        # PyTorch layouts: Conv2d weight (out, in, kH, kW); PReLU weight (1,)
        "w1": 0.1 * jax.random.normal(kw1, (HIDDEN, C, 3, 3), jnp.float32),
        "w2": 0.1 * jax.random.normal(kw2, (C, HIDDEN, 1, 1), jnp.float32),
        "prelu": jnp.full((1,), 0.25, jnp.float32),
    }
    t = jnp.float32(0.0)   # ignored by ConvODEFunc.forward

    # Weight preprocessing: once per ODE solve, NOT once per integrator step.
    prep = prepare_conv_ode_params(params)
    prep = jax.tree_util.tree_map(jax.block_until_ready, prep)

    fwd = jax.jit(conv_ode_func_forward)
    out = jax.block_until_ready(fwd(prep, t, x))
    assert out.shape == (B, C, H, W), out.shape

    ref = _forward_ref(params, t, x)
    err = float(jnp.max(jnp.abs(out - ref)))
    assert err < 1e-3, f"mismatch vs reference: {err}"
    print("KERNEL_OK")
</pallas_src>

<mosaic_0001>
module attributes {stable_mosaic.version = 11 : i64} {
  func.func @_fused_odefunc_kernel(%arg0: i32, %arg1: memref<2x8x456xf32, #tpu.memory_space<vmem>>, %arg2: memref<32x72xf32, #tpu.memory_space<vmem>>, %arg3: memref<4x32xf32, #tpu.memory_space<vmem>>, %arg4: memref<1xf32, #tpu.memory_space<smem>>, %arg5: memref<2x4x384xf32, #tpu.memory_space<vmem>>) attributes {dimension_semantics = [#tpu.dimension_semantics<arbitrary>], iteration_bounds = array<i64: 1>, scalar_prefetch = 0 : i64, scratch_operands = 0 : i64, tpu.core_type = #tpu.core_type<tc>, window_params = [{pipeline_mode = #tpu.pipeline_mode<synchronous>, transform_indices = @transform_0, window_bounds = array<i64: 2, 8, 456>}, {pipeline_mode = #tpu.pipeline_mode<synchronous>, transform_indices = @transform_1, window_bounds = array<i64: 32, 72>}, {pipeline_mode = #tpu.pipeline_mode<synchronous>, transform_indices = @transform_2, window_bounds = array<i64: 4, 32>}, {transform_indices = @transform_3, window_bounds = array<i64: 1>}, {pipeline_mode = #tpu.pipeline_mode<synchronous>, transform_indices = @transform_4, window_bounds = array<i64: 2, 4, 384>}]} {
    %c0 = arith.constant 0 : index
    %c0_0 = arith.constant 0 : index
    %c0_1 = arith.constant 0 : index
    %0 = vector.load %arg1[%c0, %c0_0, %c0_1] : memref<2x8x456xf32, #tpu.memory_space<vmem>>, vector<1x8x456xf32>
    %1 = vector.shape_cast %0 : vector<1x8x456xf32> to vector<8x456xf32>
    %c1 = arith.constant 1 : index
    %c0_2 = arith.constant 0 : index
    %c0_3 = arith.constant 0 : index
    %2 = vector.load %arg1[%c1, %c0_2, %c0_3] : memref<2x8x456xf32, #tpu.memory_space<vmem>>, vector<1x8x456xf32>
    %3 = vector.shape_cast %2 : vector<1x8x456xf32> to vector<8x456xf32>
    %4 = vector.extract_strided_slice %1 {offsets = [0, 0], sizes = [8, 384], strides = [1, 1]} : vector<8x456xf32> to vector<8x384xf32>
    %5 = vector.extract_strided_slice %3 {offsets = [0, 0], sizes = [8, 384], strides = [1, 1]} : vector<8x456xf32> to vector<8x384xf32>
    %6 = tpu.concatenate %4, %5 in 1 : vector<8x384xf32>, vector<8x384xf32> -> vector<8x768xf32>
    %7 = vector.extract_strided_slice %1 {offsets = [0, 1], sizes = [8, 384], strides = [1, 1]} : vector<8x456xf32> to vector<8x384xf32>
    %8 = vector.extract_strided_slice %3 {offsets = [0, 1], sizes = [8, 384], strides = [1, 1]} : vector<8x456xf32> to vector<8x384xf32>
    %9 = tpu.concatenate %7, %8 in 1 : vector<8x384xf32>, vector<8x384xf32> -> vector<8x768xf32>
    %10 = vector.extract_strided_slice %1 {offsets = [0, 2], sizes = [8, 384], strides = [1, 1]} : vector<8x456xf32> to vector<8x384xf32>
    %11 = vector.extract_strided_slice %3 {offsets = [0, 2], sizes = [8, 384], strides = [1, 1]} : vector<8x456xf32> to vector<8x384xf32>
    %12 = tpu.concatenate %10, %11 in 1 : vector<8x384xf32>, vector<8x384xf32> -> vector<8x768xf32>
    %13 = vector.extract_strided_slice %1 {offsets = [0, 24], sizes = [8, 384], strides = [1, 1]} : vector<8x456xf32> to vector<8x384xf32>
    %14 = vector.extract_strided_slice %3 {offsets = [0, 24], sizes = [8, 384], strides = [1, 1]} : vector<8x456xf32> to vector<8x384xf32>
    %15 = tpu.concatenate %13, %14 in 1 : vector<8x384xf32>, vector<8x384xf32> -> vector<8x768xf32>
    %16 = vector.extract_strided_slice %1 {offsets = [0, 25], sizes = [8, 384], strides = [1, 1]} : vector<8x456xf32> to vector<8x384xf32>
    %17 = vector.extract_strided_slice %3 {offsets = [0, 25], sizes = [8, 384], strides = [1, 1]} : vector<8x456xf32> to vector<8x384xf32>
    %18 = tpu.concatenate %16, %17 in 1 : vector<8x384xf32>, vector<8x384xf32> -> vector<8x768xf32>
    %19 = vector.extract_strided_slice %1 {offsets = [0, 26], sizes = [8, 384], strides = [1, 1]} : vector<8x456xf32> to vector<8x384xf32>
    %20 = vector.extract_strided_slice %3 {offsets = [0, 26], sizes = [8, 384], strides = [1, 1]} : vector<8x456xf32> to vector<8x384xf32>
    %21 = tpu.concatenate %19, %20 in 1 : vector<8x384xf32>, vector<8x384xf32> -> vector<8x768xf32>
    %22 = vector.extract_strided_slice %1 {offsets = [0, 48], sizes = [8, 384], strides = [1, 1]} : vector<8x456xf32> to vector<8x384xf32>
    %23 = vector.extract_strided_slice %3 {offsets = [0, 48], sizes = [8, 384], strides = [1, 1]} : vector<8x456xf32> to vector<8x384xf32>
    %24 = tpu.concatenate %22, %23 in 1 : vector<8x384xf32>, vector<8x384xf32> -> vector<8x768xf32>
    %25 = vector.extract_strided_slice %1 {offsets = [0, 49], sizes = [8, 384], strides = [1, 1]} : vector<8x456xf32> to vector<8x384xf32>
    %26 = vector.extract_strided_slice %3 {offsets = [0, 49], sizes = [8, 384], strides = [1, 1]} : vector<8x456xf32> to vector<8x384xf32>
    %27 = tpu.concatenate %25, %26 in 1 : vector<8x384xf32>, vector<8x384xf32> -> vector<8x768xf32>
    %28 = vector.extract_strided_slice %1 {offsets = [0, 50], sizes = [8, 384], strides = [1, 1]} : vector<8x456xf32> to vector<8x384xf32>
    %29 = vector.extract_strided_slice %3 {offsets = [0, 50], sizes = [8, 384], strides = [1, 1]} : vector<8x456xf32> to vector<8x384xf32>
    %30 = tpu.concatenate %28, %29 in 1 : vector<8x384xf32>, vector<8x384xf32> -> vector<8x768xf32>
    %31 = tpu.concatenate %6, %9, %12, %15, %18, %21, %24, %27, %30 in 0 : vector<8x768xf32>, vector<8x768xf32>, vector<8x768xf32>, vector<8x768xf32>, vector<8x768xf32>, vector<8x768xf32>, vector<8x768xf32>, vector<8x768xf32>, vector<8x768xf32> -> vector<72x768xf32>
    %c0_4 = arith.constant 0 : index
    %c0_5 = arith.constant 0 : index
    %32 = vector.load %arg2[%c0_4, %c0_5] : memref<32x72xf32, #tpu.memory_space<vmem>>, vector<32x72xf32>
    %cst = arith.constant dense<0.000000e+00> : vector<32x768xf32>
    %33 = tpu.matmul %32, %31, %cst {dimension_numbers = #tpu.dot_dimension_numbers<[1], [0], [0], [1], [0, 0, 1, 1], [], []>} : vector<32x72xf32>, vector<72x768xf32>, vector<32x768xf32> -> vector<32x768xf32>
    %c0_6 = arith.constant 0 : index
    %34 = memref.load %arg4[%c0_6] : memref<1xf32, #tpu.memory_space<smem>>
    %cst_7 = arith.constant 0.000000e+00 : f32
    %35 = vector.broadcast %cst_7 : f32 to vector<32x768xf32>
    %36 = arith.cmpf ogt, %33, %35 : vector<32x768xf32>
    %37 = vector.broadcast %34 : f32 to vector<32x768xf32>
    %38 = arith.mulf %37, %33 : vector<32x768xf32>
    %39 = arith.select %36, %33, %38 : vector<32x768xi1>, vector<32x768xf32>
    %c0_8 = arith.constant 0 : index
    %c0_9 = arith.constant 0 : index
    %40 = vector.load %arg3[%c0_8, %c0_9] : memref<4x32xf32, #tpu.memory_space<vmem>>, vector<4x32xf32>
    %cst_10 = arith.constant dense<0.000000e+00> : vector<4x768xf32>
    %41 = tpu.matmul %40, %39, %cst_10 {dimension_numbers = #tpu.dot_dimension_numbers<[1], [0], [0], [1], [0, 0, 1, 1], [], []>} : vector<4x32xf32>, vector<32x768xf32>, vector<4x768xf32> -> vector<4x768xf32>
    %42 = vector.extract_strided_slice %41 {offsets = [0, 0], sizes = [4, 384], strides = [1, 1]} : vector<4x768xf32> to vector<4x384xf32>
    %c0_11 = arith.constant 0 : index
    %c0_12 = arith.constant 0 : index
    %c0_13 = arith.constant 0 : index
    %43 = vector.load %arg5[%c0_11, %c0_12, %c0_13] : memref<2x4x384xf32, #tpu.memory_space<vmem>>, vector<1x4x384xf32>
    %44 = vector.shape_cast %43 : vector<1x4x384xf32> to vector<4x384xf32>
    %45 = vector.shape_cast %42 : vector<4x384xf32> to vector<1x4x384xf32>
    tpu.vector_store %arg5[%c0_11, %c0_12, %c0_13], %45 {strides = array<i32>} : memref<2x4x384xf32, #tpu.memory_space<vmem>>, vector<1x4x384xf32>,
    %46 = vector.extract_strided_slice %41 {offsets = [0, 384], sizes = [4, 384], strides = [1, 1]} : vector<4x768xf32> to vector<4x384xf32>
    %c1_14 = arith.constant 1 : index
    %c0_15 = arith.constant 0 : index
    %c0_16 = arith.constant 0 : index
    %47 = vector.load %arg5[%c1_14, %c0_15, %c0_16] : memref<2x4x384xf32, #tpu.memory_space<vmem>>, vector<1x4x384xf32>
    %48 = vector.shape_cast %47 : vector<1x4x384xf32> to vector<4x384xf32>
    %49 = vector.shape_cast %46 : vector<4x384xf32> to vector<1x4x384xf32>
    tpu.vector_store %arg5[%c1_14, %c0_15, %c0_16], %49 {strides = array<i32>} : memref<2x4x384xf32, #tpu.memory_space<vmem>>, vector<1x4x384xf32>,
    return
  }
  func.func @transform_0(%arg0: i32) -> (i32, i32, i32) {
    %c0_i32 = arith.constant 0 : i32
    %c0_i32_0 = arith.constant 0 : i32
    %c0_i32_1 = arith.constant 0 : i32
    %c0_i32_2 = arith.constant 0 : i32
    return %c0_i32, %c0_i32_0, %c0_i32_1 : i32, i32, i32
  }
  func.func @transform_1(%arg0: i32) -> (i32, i32) {
    %c0_i32 = arith.constant 0 : i32
    %c0_i32_0 = arith.constant 0 : i32
    %c0_i32_1 = arith.constant 0 : i32
    return %c0_i32, %c0_i32_0 : i32, i32
  }
  func.func @transform_2(%arg0: i32) -> (i32, i32) {
    %c0_i32 = arith.constant 0 : i32
    %c0_i32_0 = arith.constant 0 : i32
    %c0_i32_1 = arith.constant 0 : i32
    return %c0_i32, %c0_i32_0 : i32, i32
  }
  func.func @transform_3(%arg0: i32) -> i32 {
    %c0_i32 = arith.constant 0 : i32
    %c0_i32_0 = arith.constant 0 : i32
    return %c0_i32 : i32
  }
  func.func @transform_4(%arg0: i32) -> (i32, i32, i32) {
    %c0_i32 = arith.constant 0 : i32
    %c0_i32_0 = arith.constant 0 : i32
    %c0_i32_1 = arith.constant 0 : i32
    %c0_i32_2 = arith.constant 0 : i32
    return %c0_i32, %c0_i32_0, %c0_i32_1 : i32, i32, i32
  }
}

</mosaic_0001>

<llo_original>
// kernel: conv_ode_func_forward.1
$region0: #{conv_ode_func_forward.1}
  #allocation0 [shape = 'u32[]', space=smem, size = 0x4, offset = 0x4, fixed_abs, tag = 'smem constant byte address 0x4 - core index']
  #allocation1 [shape = 'u32[144,128]{1,0:T(1,128)}', space=vmem, size = 0x12000, scoped, tag = 'internal scratch']
  #allocation2 [shape = 'f32[1]{0:T(128)S(6)}', space=smem, size = 0x200, scoped, tag = 'scoped memory for conv_ode_func_forward.1']
  %s0 = inlined_call_operand.vmem [shape: f32[2,8,456], index: 0, kind: input, shape index: {}]
  %s1 = inlined_call_operand.vmem [shape: f32[32,72], index: 1, kind: input, shape index: {}]
  %s2 = inlined_call_operand.vmem [shape: f32[4,32], index: 2, kind: input, shape index: {}]
  %s3 = inlined_call_operand.<no memory space> [shape: f32[1], index: 3, kind: input, shape index: {}]
  %s4 = inlined_call_operand.vmem [shape: f32[2,4,384], index: 4, kind: output, shape index: {}]
  %s5 = sld [smem:[#allocation0]]
  $region26: #{conv_ode_func_forward.1} parent=0
    _
  %s7 = ssub.s32 1, %s5
  %s8 = scalar_select 0, %s7, %s5
  %9 = sst [smem:[#allocation2]] %s3
  // Predicated region
  $region2: #{conv_ode_func_forward.1} parent=0 // pred_check
    _
  $region3: #{conv_ode_func_forward.1} parent=0 // pred_check_branch
    %11 = sbr.rel (0) target = $region5
  $region4: #{conv_ode_func_forward.1} parent=0 // pred_region
    _
  $region5: #{conv_ode_func_forward.1} parent=0 // pred_fallthru
    _
  // Predicated region
  $region6: #{conv_ode_func_forward.1} parent=0 // pred_check
    _
  $region7: #{conv_ode_func_forward.1} parent=0 // pred_check_branch
    %13 = sbr.rel (0) target = $region9
  $region8: #{conv_ode_func_forward.1} parent=0 // pred_region
    _
  $region9: #{conv_ode_func_forward.1} parent=0 // pred_fallthru
    _
  // Predicated region
  $region10: #{conv_ode_func_forward.1} parent=0 // pred_check
    _
  $region11: #{conv_ode_func_forward.1} parent=0 // pred_check_branch
    %15 = sbr.rel (0) target = $region13
  $region12: #{conv_ode_func_forward.1} parent=0 // pred_region
    _
  $region13: #{conv_ode_func_forward.1} parent=0 // pred_fallthru
    _
  // Predicated region
  $region14: #{conv_ode_func_forward.1} parent=0 // pred_check
    _
  $region15: #{conv_ode_func_forward.1} parent=0 // pred_check_branch
    %17 = sbr.rel (0) target = $region17
  $region16: #{conv_ode_func_forward.1} parent=0 // pred_region
    _
  $region17: #{conv_ode_func_forward.1} parent=0 // pred_fallthru
    _
  %v18 = vld [vmem:[%s0] sm:$0xff]
  %v19 = vld [vmem:[%s0 + $0x8] sm:$0xff]
  %v20 = vld [vmem:[%s0 + $0x10] sm:$0xff]
  %v21 = vld [vmem:[%s0 + $0x18] sm:$0xff]
  %s22 = scalar_lea.vmem %s0, 32
  %v23 = vld [vmem:[%s22] sm:$0xff]
  %v24 = vld [vmem:[%s22 + $0x8] sm:$0xff]
  %v25 = vld [vmem:[%s22 + $0x10] sm:$0xff]
  %v26 = vld [vmem:[%s22 + $0x18] sm:$0xff]
  %31 = vrot.lane.b32.xlu0 %v18, 127
  %v32 = vpop.permute.xlu0 %31
  %33 = vrot.lane.b32.xlu0 %v19, 127
  %v34 = vpop.permute.xlu0 %33
  %35 = vrot.lane.b32.xlu0 %v20, 127
  %v36 = vpop.permute.xlu0 %35
  %37 = vrot.lane.b32.xlu0 %v21, 127
  %v38 = vpop.permute.xlu0 %37
  %vm39 = vcmask 1039360
  %v40 = vsel %vm39, %v32, %v34
  %v41 = vsel %vm39, %v34, %v36
  %v42 = vsel %vm39, %v36, %v38
  %50 = vrot.lane.b32.xlu0 %v23, 127
  %v51 = vpop.permute.xlu0 %50
  %52 = vrot.lane.b32.xlu0 %v24, 127
  %v53 = vpop.permute.xlu0 %52
  %54 = vrot.lane.b32.xlu0 %v25, 127
  %v55 = vpop.permute.xlu0 %54
  %56 = vrot.lane.b32.xlu0 %v26, 127
  %v57 = vpop.permute.xlu0 %56
  %v58 = vsel %vm39, %v51, %v53
  %v59 = vsel %vm39, %v53, %v55
  %v60 = vsel %vm39, %v55, %v57
  %64 = vrot.lane.b32.xlu0 %v18, 126
  %v65 = vpop.permute.xlu0 %64
  %66 = vrot.lane.b32.xlu0 %v19, 126
  %v67 = vpop.permute.xlu0 %66
  %68 = vrot.lane.b32.xlu0 %v20, 126
  %v69 = vpop.permute.xlu0 %68
  %70 = vrot.lane.b32.xlu0 %v21, 126
  %v71 = vpop.permute.xlu0 %70
  %vm72 = vcmask 1031168
  %v73 = vsel %vm72, %v65, %v67
  %v74 = vsel %vm72, %v67, %v69
  %v75 = vsel %vm72, %v69, %v71
  %79 = vrot.lane.b32.xlu0 %v23, 126
  %v80 = vpop.permute.xlu0 %79
  %81 = vrot.lane.b32.xlu0 %v24, 126
  %v82 = vpop.permute.xlu0 %81
  %83 = vrot.lane.b32.xlu0 %v25, 126
  %v84 = vpop.permute.xlu0 %83
  %85 = vrot.lane.b32.xlu0 %v26, 126
  %v86 = vpop.permute.xlu0 %85
  %v87 = vsel %vm72, %v80, %v82
  %v88 = vsel %vm72, %v82, %v84
  %v89 = vsel %vm72, %v84, %v86
  %93 = vrot.lane.b32.xlu0 %v18, 104
  %v94 = vpop.permute.xlu0 %93
  %95 = vrot.lane.b32.xlu0 %v19, 104
  %v96 = vpop.permute.xlu0 %95
  %97 = vrot.lane.b32.xlu0 %v20, 104
  %v98 = vpop.permute.xlu0 %97
  %99 = vrot.lane.b32.xlu0 %v21, 104
  %v100 = vpop.permute.xlu0 %99
  %vm101 = vcmask 850944
  %v102 = vsel %vm101, %v94, %v96
  %v103 = vsel %vm101, %v96, %v98
  %v104 = vsel %vm101, %v98, %v100
  %108 = vrot.lane.b32.xlu0 %v23, 104
  %v109 = vpop.permute.xlu0 %108
  %110 = vrot.lane.b32.xlu0 %v24, 104
  %v111 = vpop.permute.xlu0 %110
  %112 = vrot.lane.b32.xlu0 %v25, 104
  %v113 = vpop.permute.xlu0 %112
  %114 = vrot.lane.b32.xlu0 %v26, 104
  %v115 = vpop.permute.xlu0 %114
  %v116 = vsel %vm101, %v109, %v111
  %v117 = vsel %vm101, %v111, %v113
  %v118 = vsel %vm101, %v113, %v115
  %122 = vrot.lane.b32.xlu0 %v18, 103
  %v123 = vpop.permute.xlu0 %122
  %124 = vrot.lane.b32.xlu0 %v19, 103
  %v125 = vpop.permute.xlu0 %124
  %126 = vrot.lane.b32.xlu0 %v20, 103
  %v127 = vpop.permute.xlu0 %126
  %128 = vrot.lane.b32.xlu0 %v21, 103
  %v129 = vpop.permute.xlu0 %128
  %vm130 = vcmask 842752
  %v131 = vsel %vm130, %v123, %v125
  %v132 = vsel %vm130, %v125, %v127
  %v133 = vsel %vm130, %v127, %v129
  %137 = vrot.lane.b32.xlu0 %v23, 103
  %v138 = vpop.permute.xlu0 %137
  %139 = vrot.lane.b32.xlu0 %v24, 103
  %v140 = vpop.permute.xlu0 %139
  %141 = vrot.lane.b32.xlu0 %v25, 103
  %v142 = vpop.permute.xlu0 %141
  %143 = vrot.lane.b32.xlu0 %v26, 103
  %v144 = vpop.permute.xlu0 %143
  %v145 = vsel %vm130, %v138, %v140
  %v146 = vsel %vm130, %v140, %v142
  %v147 = vsel %vm130, %v142, %v144
  %151 = vrot.lane.b32.xlu0 %v18, 102
  %v152 = vpop.permute.xlu0 %151
  %153 = vrot.lane.b32.xlu0 %v19, 102
  %v154 = vpop.permute.xlu0 %153
  %155 = vrot.lane.b32.xlu0 %v20, 102
  %v156 = vpop.permute.xlu0 %155
  %157 = vrot.lane.b32.xlu0 %v21, 102
  %v158 = vpop.permute.xlu0 %157
  %vm159 = vcmask 834560
  %v160 = vsel %vm159, %v152, %v154
  %v161 = vsel %vm159, %v154, %v156
  %v162 = vsel %vm159, %v156, %v158
  %166 = vrot.lane.b32.xlu0 %v23, 102
  %v167 = vpop.permute.xlu0 %166
  %168 = vrot.lane.b32.xlu0 %v24, 102
  %v169 = vpop.permute.xlu0 %168
  %170 = vrot.lane.b32.xlu0 %v25, 102
  %v171 = vpop.permute.xlu0 %170
  %172 = vrot.lane.b32.xlu0 %v26, 102
  %v173 = vpop.permute.xlu0 %172
  %v174 = vsel %vm159, %v167, %v169
  %v175 = vsel %vm159, %v169, %v171
  %v176 = vsel %vm159, %v171, %v173
  %180 = vrot.lane.b32.xlu0 %v18, 80
  %v181 = vpop.permute.xlu0 %180
  %182 = vrot.lane.b32.xlu0 %v19, 80
  %v183 = vpop.permute.xlu0 %182
  %184 = vrot.lane.b32.xlu0 %v20, 80
  %v185 = vpop.permute.xlu0 %184
  %186 = vrot.lane.b32.xlu0 %v21, 80
  %v187 = vpop.permute.xlu0 %186
  %vm188 = vcmask 654336
  %v189 = vsel %vm188, %v181, %v183
  %v190 = vsel %vm188, %v183, %v185
  %v191 = vsel %vm188, %v185, %v187
  %195 = vrot.lane.b32.xlu0 %v23, 80
  %v196 = vpop.permute.xlu0 %195
  %197 = vrot.lane.b32.xlu0 %v24, 80
  %v198 = vpop.permute.xlu0 %197
  %199 = vrot.lane.b32.xlu0 %v25, 80
  %v200 = vpop.permute.xlu0 %199
  %201 = vrot.lane.b32.xlu0 %v26, 80
  %v202 = vpop.permute.xlu0 %201
  %v203 = vsel %vm188, %v196, %v198
  %v204 = vsel %vm188, %v198, %v200
  %v205 = vsel %vm188, %v200, %v202
  %209 = vrot.lane.b32.xlu0 %v18, 79
  %v210 = vpop.permute.xlu0 %209
  %211 = vrot.lane.b32.xlu0 %v19, 79
  %v212 = vpop.permute.xlu0 %211
  %213 = vrot.lane.b32.xlu0 %v20, 79
  %v214 = vpop.permute.xlu0 %213
  %215 = vrot.lane.b32.xlu0 %v21, 79
  %v216 = vpop.permute.xlu0 %215
  %vm217 = vcmask 646144
  %v218 = vsel %vm217, %v210, %v212
  %v219 = vsel %vm217, %v212, %v214
  %v220 = vsel %vm217, %v214, %v216
  %224 = vrot.lane.b32.xlu0 %v23, 79
  %v225 = vpop.permute.xlu0 %224
  %226 = vrot.lane.b32.xlu0 %v24, 79
  %v227 = vpop.permute.xlu0 %226
  %228 = vrot.lane.b32.xlu0 %v25, 79
  %v229 = vpop.permute.xlu0 %228
  %230 = vrot.lane.b32.xlu0 %v26, 79
  %v231 = vpop.permute.xlu0 %230
  %v232 = vsel %vm217, %v225, %v227
  %v233 = vsel %vm217, %v227, %v229
  %v234 = vsel %vm217, %v229, %v231
  %238 = vrot.lane.b32.xlu0 %v18, 78
  %v239 = vpop.permute.xlu0 %238
  %240 = vrot.lane.b32.xlu0 %v19, 78
  %v241 = vpop.permute.xlu0 %240
  %242 = vrot.lane.b32.xlu0 %v20, 78
  %v243 = vpop.permute.xlu0 %242
  %244 = vrot.lane.b32.xlu0 %v21, 78
  %v245 = vpop.permute.xlu0 %244
  %vm246 = vcmask 637952
  %v247 = vsel %vm246, %v239, %v241
  %v248 = vsel %vm246, %v241, %v243
  %v249 = vsel %vm246, %v243, %v245
  %253 = vrot.lane.b32.xlu0 %v23, 78
  %v254 = vpop.permute.xlu0 %253
  %255 = vrot.lane.b32.xlu0 %v24, 78
  %v256 = vpop.permute.xlu0 %255
  %257 = vrot.lane.b32.xlu0 %v25, 78
  %v258 = vpop.permute.xlu0 %257
  %259 = vrot.lane.b32.xlu0 %v26, 78
  %v260 = vpop.permute.xlu0 %259
  %v261 = vsel %vm246, %v254, %v256
  %v262 = vsel %vm246, %v256, %v258
  %v263 = vsel %vm246, %v258, %v260
  %v267 = vld [vmem:[%s1] sm:$0xff]
  %v268 = vld [vmem:[%s1 + $0x8] sm:$0xff]
  %v269 = vld [vmem:[%s1 + $0x10] sm:$0xff]
  %v270 = vld [vmem:[%s1 + $0x18] sm:$0xff]
  %vm271 = vcmask 588800
  %v273 = vsel %vm271, %v267, 0
  %v276 = vsel %vm271, %v268, 0
  %v279 = vsel %vm271, %v269, 0
  %v282 = vsel %vm271, %v270, 0
  %284 = vmatprep.subr.mxu0 %v19
  %285 = vmatpush1.msra.mxu0 %v18
  %286 = vmatprep.subr.mxu0 %v41
  %287 = vmatpush1.msra.mxu0 %v40
  %288 = vmatprep.subr.mxu0 %v74
  %289 = vmatpush1.msra.mxu0 %v73
  %290 = vmatprep.subr.mxu0 %v103
  %291 = vmatpush1.msra.mxu0 %v102
  %292 = vmatprep.subr.mxu0 %v132
  %293 = vmatpush1.msra.mxu0 %v131
  %294 = vmatprep.subr.mxu0 %v161
  %295 = vmatpush1.msra.mxu0 %v160
  %296 = vmatprep.subr.mxu0 %v190
  %297 = vmatpush1.msra.mxu0 %v189
  %298 = vmatprep.subr.mxu0 %v219
  %299 = vmatpush1.msra.mxu0 %v218
  %300 = vmatprep.subr.mxu0 %v248
  %301 = vmatpush1.msra.mxu0 %v247
  %302 = vmatprep.subr.mxu0 0.0
  %303 = vmatpush1.msra.mxu0 0.0
  %304 = vmatprep.subr.mxu0 0.0
  %305 = vmatpush1.msra.mxu0 0.0
  %306 = vmatprep.subr.mxu0 0.0
  %307 = vmatpush1.msra.mxu0 0.0
  %308 = vmatprep.subr.mxu0 0.0
  %309 = vmatpush1.msra.mxu0 0.0
  %310 = vmatprep.subr.mxu0 0.0
  %311 = vmatpush1.msra.mxu0 0.0
  %312 = vmatprep.subr.mxu0 0.0
  %313 = vmatpush1.msra.mxu0 0.0
  %314 = vmatprep.subr.mxu0 0.0
  %315 = vmatpush1.msra.mxu0 0.0
  %316 = vmatprep.subr.mxu0 0.0
  %317 = vmatpush1.msra.mxu0 0.0
  %318 = vmatprep.subr.mxu0 0.0
  %319 = vmatpush1.msra.mxu0 0.0
  %320 = vmatprep.subr.mxu0 0.0
  %321 = vmatpush1.msra.mxu0 0.0
  %322 = vmatprep.subr.mxu0 0.0
  %323 = vmatpush1.msra.mxu0 0.0
  %324 = vmatprep.subr.mxu0 0.0
  %325 = vmatpush1.msra.mxu0 0.0
  %326 = vmatprep.subr.mxu0 0.0
  %327 = vmatpush1.msra.mxu0 0.0
  %328 = vmatprep.subr.mxu0 0.0
  %329 = vmatpush1.msra.mxu0 0.0
  %330 = vmatprep.subr.mxu0 0.0
  %331 = vmatpush1.msra.mxu0 0.0
  %332 = vmatprep.subr.mxu0 0.0
  %333 = vmatpush1.msra.mxu0 0.0
  %334 = vmatprep.subr.mxu0 0.0
  %335 = vmatpush1.msra.mxu0 0.0
  %336 = vmatprep.subr.mxu0 0.0
  %337 = vmatpush1.msra.mxu0 0.0
  %338 = vmatprep.subr.mxu0 0.0
  %339 = vmatpush1.msra.mxu0 0.0
  %340 = vmatprep.subr.mxu0 0.0
  %341 = vmatpush1.msra.mxu0 0.0
  %342 = vmatprep.subr.mxu0 0.0
  %343 = vmatpush1.msra.mxu0 0.0
  %344 = vmatprep.subr.mxu0 0.0
  %345 = vmatpush1.msra.mxu0 0.0
  %346 = vmatprep.subr.mxu0 0.0
  %347 = vmatpush1.msra.mxu0 0.0
  %348 = vmatprep.mubr.f32.mxu0 0.0
  %349 = vmatmul.mubr.f32.gmra.mrb[0].mxu0 %v273
  %v350 = vpop.f32.mrb[0].mxu0
  %v351 = vadd.f32 0.0, %v350
  %v352 = vpop.f32.mrb[0].mxu0
  %v353 = vadd.f32 0.0, %v352
  %354 = vmatprep.mubr.f32.mxu0 0.0
  %355 = vmatmul.mubr.f32.gmra.mrb[0].mxu0 %v276
  %v356 = vpop.f32.mrb[0].mxu0
  %v357 = vadd.f32 0.0, %v356
  %v358 = vpop.f32.mrb[0].mxu0
  %v359 = vadd.f32 0.0, %v358
  %360 = vmatprep.mubr.f32.mxu0 0.0
  %361 = vmatmul.mubr.f32.gmra.mrb[0].mxu0 %v279
  %v362 = vpop.f32.mrb[0].mxu0
  %v363 = vadd.f32 0.0, %v362
  %v364 = vpop.f32.mrb[0].mxu0
  %v365 = vadd.f32 0.0, %v364
  %366 = vmatprep.mubr.f32.mxu0 0.0
  %367 = vmatmul.mubr.f32.gmra.mrb[0].mxu0 %v282
  %v368 = vpop.f32.mrb[0].mxu0
  %v369 = vadd.f32 0.0, %v368
  %v370 = vpop.f32.mrb[0].mxu0
  %v371 = vadd.f32 0.0, %v370
  %372 = vdwg.mxu0
  %373 = vmatprep.subr.mxu0 %v23
  %374 = vmatpush1.msra.mxu0 %v20
  %375 = vmatprep.subr.mxu0 %v58
  %376 = vmatpush1.msra.mxu0 %v42
  %377 = vmatprep.subr.mxu0 %v87
  %378 = vmatpush1.msra.mxu0 %v75
  %379 = vmatprep.subr.mxu0 %v116
  %380 = vmatpush1.msra.mxu0 %v104
  %381 = vmatprep.subr.mxu0 %v145
  %382 = vmatpush1.msra.mxu0 %v133
  %383 = vmatprep.subr.mxu0 %v174
  %384 = vmatpush1.msra.mxu0 %v162
  %385 = vmatprep.subr.mxu0 %v203
  %386 = vmatpush1.msra.mxu0 %v191
  %387 = vmatprep.subr.mxu0 %v232
  %388 = vmatpush1.msra.mxu0 %v220
  %389 = vmatprep.subr.mxu0 %v261
  %390 = vmatpush1.msra.mxu0 %v249
  %391 = vmatprep.subr.mxu0 0.0
  %392 = vmatpush1.msra.mxu0 0.0
  %393 = vmatprep.subr.mxu0 0.0
  %394 = vmatpush1.msra.mxu0 0.0
  %395 = vmatprep.subr.mxu0 0.0
  %396 = vmatpush1.msra.mxu0 0.0
  %397 = vmatprep.subr.mxu0 0.0
  %398 = vmatpush1.msra.mxu0 0.0
  %399 = vmatprep.subr.mxu0 0.0
  %400 = vmatpush1.msra.mxu0 0.0
  %401 = vmatprep.subr.mxu0 0.0
  %402 = vmatpush1.msra.mxu0 0.0
  %403 = vmatprep.subr.mxu0 0.0
  %404 = vmatpush1.msra.mxu0 0.0
  %405 = vmatprep.subr.mxu0 0.0
  %406 = vmatpush1.msra.mxu0 0.0
  %407 = vmatprep.subr.mxu0 0.0
  %408 = vmatpush1.msra.mxu0 0.0
  %409 = vmatprep.subr.mxu0 0.0
  %410 = vmatpush1.msra.mxu0 0.0
  %411 = vmatprep.subr.mxu0 0.0
  %412 = vmatpush1.msra.mxu0 0.0
  %413 = vmatprep.subr.mxu0 0.0
  %414 = vmatpush1.msra.mxu0 0.0
  %415 = vmatprep.subr.mxu0 0.0
  %416 = vmatpush1.msra.mxu0 0.0
  %417 = vmatprep.subr.mxu0 0.0
  %418 = vmatpush1.msra.mxu0 0.0
  %419 = vmatprep.subr.mxu0 0.0
  %420 = vmatpush1.msra.mxu0 0.0
  %421 = vmatprep.subr.mxu0 0.0
  %422 = vmatpush1.msra.mxu0 0.0
  %423 = vmatprep.subr.mxu0 0.0
  %424 = vmatpush1.msra.mxu0 0.0
  %425 = vmatprep.subr.mxu0 0.0
  %426 = vmatpush1.msra.mxu0 0.0
  %427 = vmatprep.subr.mxu0 0.0
  %428 = vmatpush1.msra.mxu0 0.0
  %429 = vmatprep.subr.mxu0 0.0
  %430 = vmatpush1.msra.mxu0 0.0
  %431 = vmatprep.subr.mxu0 0.0
  %432 = vmatpush1.msra.mxu0 0.0
  %433 = vmatprep.subr.mxu0 0.0
  %434 = vmatpush1.msra.mxu0 0.0
  %435 = vmatprep.subr.mxu0 0.0
  %436 = vmatpush1.msra.mxu0 0.0
  %437 = vmatprep.mubr.f32.mxu0 0.0
  %438 = vmatmul.mubr.f32.gmra.mrb[0].mxu0 %v273
  %v439 = vpop.f32.mrb[0].mxu0
  %v440 = vadd.f32 0.0, %v439
  %v441 = vpop.f32.mrb[0].mxu0
  %v442 = vadd.f32 0.0, %v441
  %443 = vmatprep.mubr.f32.mxu0 0.0
  %444 = vmatmul.mubr.f32.gmra.mrb[0].mxu0 %v276
  %v445 = vpop.f32.mrb[0].mxu0
  %v446 = vadd.f32 0.0, %v445
  %v447 = vpop.f32.mrb[0].mxu0
  %v448 = vadd.f32 0.0, %v447
  %449 = vmatprep.mubr.f32.mxu0 0.0
  %450 = vmatmul.mubr.f32.gmra.mrb[0].mxu0 %v279
  %v451 = vpop.f32.mrb[0].mxu0
  %v452 = vadd.f32 0.0, %v451
  %v453 = vpop.f32.mrb[0].mxu0
  %v454 = vadd.f32 0.0, %v453
  %455 = vmatprep.mubr.f32.mxu0 0.0
  %456 = vmatmul.mubr.f32.gmra.mrb[0].mxu0 %v282
  %v457 = vpop.f32.mrb[0].mxu0
  %v458 = vadd.f32 0.0, %v457
  %v459 = vpop.f32.mrb[0].mxu0
  %v460 = vadd.f32 0.0, %v459
  %461 = vdwg.mxu0
  %462 = vmatprep.subr.mxu0 %v25
  %463 = vmatpush1.msra.mxu0 %v24
  %464 = vmatprep.subr.mxu0 %v60
  %465 = vmatpush1.msra.mxu0 %v59
  %466 = vmatprep.subr.mxu0 %v89
  %467 = vmatpush1.msra.mxu0 %v88
  %468 = vmatprep.subr.mxu0 %v118
  %469 = vmatpush1.msra.mxu0 %v117
  %470 = vmatprep.subr.mxu0 %v147
  %471 = vmatpush1.msra.mxu0 %v146
  %472 = vmatprep.subr.mxu0 %v176
  %473 = vmatpush1.msra.mxu0 %v175
  %474 = vmatprep.subr.mxu0 %v205
  %475 = vmatpush1.msra.mxu0 %v204
  %476 = vmatprep.subr.mxu0 %v234
  %477 = vmatpush1.msra.mxu0 %v233
  %478 = vmatprep.subr.mxu0 %v263
  %479 = vmatpush1.msra.mxu0 %v262
  %480 = vmatprep.subr.mxu0 0.0
  %481 = vmatpush1.msra.mxu0 0.0
  %482 = vmatprep.subr.mxu0 0.0
  %483 = vmatpush1.msra.mxu0 0.0
  %484 = vmatprep.subr.mxu0 0.0
  %485 = vmatpush1.msra.mxu0 0.0
  %486 = vmatprep.subr.mxu0 0.0
  %487 = vmatpush1.msra.mxu0 0.0
  %488 = vmatprep.subr.mxu0 0.0
  %489 = vmatpush1.msra.mxu0 0.0
  %490 = vmatprep.subr.mxu0 0.0
  %491 = vmatpush1.msra.mxu0 0.0
  %492 = vmatprep.subr.mxu0 0.0
  %493 = vmatpush1.msra.mxu0 0.0
  %494 = vmatprep.subr.mxu0 0.0
  %495 = vmatpush1.msra.mxu0 0.0
  %496 = vmatprep.subr.mxu0 0.0
  %497 = vmatpush1.msra.mxu0 0.0
  %498 = vmatprep.subr.mxu0 0.0
  %499 = vmatpush1.msra.mxu0 0.0
  %500 = vmatprep.subr.mxu0 0.0
  %501 = vmatpush1.msra.mxu0 0.0
  %502 = vmatprep.subr.mxu0 0.0
  %503 = vmatpush1.msra.mxu0 0.0
  %504 = vmatprep.subr.mxu0 0.0
  %505 = vmatpush1.msra.mxu0 0.0
  %506 = vmatprep.subr.mxu0 0.0
  %507 = vmatpush1.msra.mxu0 0.0
  %508 = vmatprep.subr.mxu0 0.0
  %509 = vmatpush1.msra.mxu0 0.0
  %510 = vmatprep.subr.mxu0 0.0
  %511 = vmatpush1.msra.mxu0 0.0
  %512 = vmatprep.subr.mxu0 0.0
  %513 = vmatpush1.msra.mxu0 0.0
  %514 = vmatprep.subr.mxu0 0.0
  %515 = vmatpush1.msra.mxu0 0.0
  %516 = vmatprep.subr.mxu0 0.0
  %517 = vmatpush1.msra.mxu0 0.0
  %518 = vmatprep.subr.mxu0 0.0
  %519 = vmatpush1.msra.mxu0 0.0
  %520 = vmatprep.subr.mxu0 0.0
  %521 = vmatpush1.msra.mxu0 0.0
  %522 = vmatprep.subr.mxu0 0.0
  %523 = vmatpush1.msra.mxu0 0.0
  %524 = vmatprep.subr.mxu0 0.0
  %525 = vmatpush1.msra.mxu0 0.0
  %526 = vmatprep.mubr.f32.mxu0 0.0
  %527 = vmatmul.mubr.f32.gmra.mrb[0].mxu0 %v273
  %v528 = vpop.f32.mrb[0].mxu0
  %v529 = vadd.f32 0.0, %v528
  %v530 = vpop.f32.mrb[0].mxu0
  %v531 = vadd.f32 0.0, %v530
  %532 = vmatprep.mubr.f32.mxu0 0.0
  %533 = vmatmul.mubr.f32.gmra.mrb[0].mxu0 %v276
  %v534 = vpop.f32.mrb[0].mxu0
  %v535 = vadd.f32 0.0, %v534
  %v536 = vpop.f32.mrb[0].mxu0
  %v537 = vadd.f32 0.0, %v536
  %538 = vmatprep.mubr.f32.mxu0 0.0
  %539 = vmatmul.mubr.f32.gmra.mrb[0].mxu0 %v279
  %v540 = vpop.f32.mrb[0].mxu0
  %v541 = vadd.f32 0.0, %v540
  %v542 = vpop.f32.mrb[0].mxu0
  %v543 = vadd.f32 0.0, %v542
  %544 = vmatprep.mubr.f32.mxu0 0.0
  %545 = vmatmul.mubr.f32.gmra.mrb[0].mxu0 %v282
  %v546 = vpop.f32.mrb[0].mxu0
  %v547 = vadd.f32 0.0, %v546
  %v548 = vpop.f32.mrb[0].mxu0
  %v549 = vadd.f32 0.0, %v548
  %550 = vdwg.mxu0
  %s551 = sld [smem:[#allocation2]]
  %vm552 = vcmp.gt.f32.partialorder %v351, 0.0
  %vm553 = vcmp.gt.f32.partialorder %v353, 0.0
  %vm554 = vcmp.gt.f32.partialorder %v440, 0.0
  %vm555 = vcmp.gt.f32.partialorder %v442, 0.0
  %vm556 = vcmp.gt.f32.partialorder %v529, 0.0
  %vm557 = vcmp.gt.f32.partialorder %v531, 0.0
  %vm558 = vcmp.gt.f32.partialorder %v357, 0.0
  %vm559 = vcmp.gt.f32.partialorder %v359, 0.0
  %vm560 = vcmp.gt.f32.partialorder %v446, 0.0
  %vm561 = vcmp.gt.f32.partialorder %v448, 0.0
  %vm562 = vcmp.gt.f32.partialorder %v535, 0.0
  %vm563 = vcmp.gt.f32.partialorder %v537, 0.0
  %vm564 = vcmp.gt.f32.partialorder %v363, 0.0
  %vm565 = vcmp.gt.f32.partialorder %v365, 0.0
  %vm566 = vcmp.gt.f32.partialorder %v452, 0.0
  %vm567 = vcmp.gt.f32.partialorder %v454, 0.0
  %vm568 = vcmp.gt.f32.partialorder %v541, 0.0
  %vm569 = vcmp.gt.f32.partialorder %v543, 0.0
  %vm570 = vcmp.gt.f32.partialorder %v369, 0.0
  %vm571 = vcmp.gt.f32.partialorder %v371, 0.0
  %vm572 = vcmp.gt.f32.partialorder %v458, 0.0
  %vm573 = vcmp.gt.f32.partialorder %v460, 0.0
  %vm574 = vcmp.gt.f32.partialorder %v547, 0.0
  %vm575 = vcmp.gt.f32.partialorder %v549, 0.0
  %v576 = vstv %s551
  %v577 = vmul.f32 %v576, %v351
  %v578 = vmul.f32 %v576, %v353
  %v579 = vmul.f32 %v576, %v440
  %v580 = vmul.f32 %v576, %v442
  %v581 = vmul.f32 %v576, %v529
  %v582 = vmul.f32 %v576, %v531
  %v583 = vmul.f32 %v576, %v357
  %v584 = vmul.f32 %v576, %v359
  %v585 = vmul.f32 %v576, %v446
  %v586 = vmul.f32 %v576, %v448
  %v587 = vmul.f32 %v576, %v535
  %v588 = vmul.f32 %v576, %v537
  %v589 = vmul.f32 %v576, %v363
  %v590 = vmul.f32 %v576, %v365
  %v591 = vmul.f32 %v576, %v452
  %v592 = vmul.f32 %v576, %v454
  %v593 = vmul.f32 %v576, %v541
  %v594 = vmul.f32 %v576, %v543
  %v595 = vmul.f32 %v576, %v369
  %v596 = vmul.f32 %v576, %v371
  %v597 = vmul.f32 %v576, %v458
  %v598 = vmul.f32 %v576, %v460
  %v599 = vmul.f32 %v576, %v547
  %v600 = vmul.f32 %v576, %v549
  %v601 = vsel %vm552, %v351, %v577
  %v602 = vsel %vm553, %v353, %v578
  %v603 = vsel %vm554, %v440, %v579
  %v604 = vsel %vm555, %v442, %v580
  %v605 = vsel %vm556, %v529, %v581
  %v606 = vsel %vm557, %v531, %v582
  %v607 = vsel %vm558, %v357, %v583
  %v608 = vsel %vm559, %v359, %v584
  %v609 = vsel %vm560, %v446, %v585
  %v610 = vsel %vm561, %v448, %v586
  %v611 = vsel %vm562, %v535, %v587
  %v612 = vsel %vm563, %v537, %v588
  %v613 = vsel %vm564, %v363, %v589
  %v614 = vsel %vm565, %v365, %v590
  %v615 = vsel %vm566, %v452, %v591
  %v616 = vsel %vm567, %v454, %v592
  %v617 = vsel %vm568, %v541, %v593
  %v618 = vsel %vm569, %v543, %v594
  %v619 = vsel %vm570, %v369, %v595
  %v620 = vsel %vm571, %v371, %v596
  %v621 = vsel %vm572, %v458, %v597
  %v622 = vsel %vm573, %v460, %v598
  %v623 = vsel %vm574, %v547, %v599
  %v624 = vsel %vm575, %v549, %v600
  %v625 = vld [vmem:[%s2] sm:$0xf]
  %vm626 = vcmask 261120
  %v628 = vsel %vm626, %v625, 0
  %630 = vmatprep.subr.mxu0 %v602
  %631 = vmatpush1.msra.mxu0 %v601
  %632 = vmatprep.subr.mxu0 %v608
  %633 = vmatpush1.msra.mxu0 %v607
  %634 = vmatprep.subr.mxu0 %v614
  %635 = vmatpush1.msra.mxu0 %v613
  %636 = vmatprep.subr.mxu0 %v620
  %637 = vmatpush1.msra.mxu0 %v619
  %638 = vmatprep.subr.mxu0 0.0
  %639 = vmatpush1.msra.mxu0 0.0
  %640 = vmatprep.subr.mxu0 0.0
  %641 = vmatpush1.msra.mxu0 0.0
  %642 = vmatprep.subr.mxu0 0.0
  %643 = vmatpush1.msra.mxu0 0.0
  %644 = vmatprep.subr.mxu0 0.0
  %645 = vmatpush1.msra.mxu0 0.0
  %646 = vmatprep.subr.mxu0 0.0
  %647 = vmatpush1.msra.mxu0 0.0
  %648 = vmatprep.subr.mxu0 0.0
  %649 = vmatpush1.msra.mxu0 0.0
  %650 = vmatprep.subr.mxu0 0.0
  %651 = vmatpush1.msra.mxu0 0.0
  %652 = vmatprep.subr.mxu0 0.0
  %653 = vmatpush1.msra.mxu0 0.0
  %654 = vmatprep.subr.mxu0 0.0
  %655 = vmatpush1.msra.mxu0 0.0
  %656 = vmatprep.subr.mxu0 0.0
  %657 = vmatpush1.msra.mxu0 0.0
  %658 = vmatprep.subr.mxu0 0.0
  %659 = vmatpush1.msra.mxu0 0.0
  %660 = vmatprep.subr.mxu0 0.0
  %661 = vmatpush1.msra.mxu0 0.0
  %662 = vmatprep.subr.mxu0 0.0
  %663 = vmatpush1.msra.mxu0 0.0
  %664 = vmatprep.subr.mxu0 0.0
  %665 = vmatpush1.msra.mxu0 0.0
  %666 = vmatprep.subr.mxu0 0.0
  %667 = vmatpush1.msra.mxu0 0.0
  %668 = vmatprep.subr.mxu0 0.0
  %669 = vmatpush1.msra.mxu0 0.0
  %670 = vmatprep.subr.mxu0 0.0
  %671 = vmatpush1.msra.mxu0 0.0
  %672 = vmatprep.subr.mxu0 0.0
  %673 = vmatpush1.msra.mxu0 0.0
  %674 = vmatprep.subr.mxu0 0.0
  %675 = vmatpush1.msra.mxu0 0.0
  %676 = vmatprep.subr.mxu0 0.0
  %677 = vmatpush1.msra.mxu0 0.0
  %678 = vmatprep.subr.mxu0 0.0
  %679 = vmatpush1.msra.mxu0 0.0
  %680 = vmatprep.subr.mxu0 0.0
  %681 = vmatpush1.msra.mxu0 0.0
  %682 = vmatprep.subr.mxu0 0.0
  %683 = vmatpush1.msra.mxu0 0.0
  %684 = vmatprep.subr.mxu0 0.0
  %685 = vmatpush1.msra.mxu0 0.0
  %686 = vmatprep.subr.mxu0 0.0
  %687 = vmatpush1.msra.mxu0 0.0
  %688 = vmatprep.subr.mxu0 0.0
  %689 = vmatpush1.msra.mxu0 0.0
  %690 = vmatprep.subr.mxu0 0.0
  %691 = vmatpush1.msra.mxu0 0.0
  %692 = vmatprep.subr.mxu0 0.0
  %693 = vmatpush1.msra.mxu0 0.0
  %694 = vmatprep.mubr.f32.mxu0 0.0
  %695 = vmatmul.mubr.f32.gmra.mrb[0].mxu0 %v628
  %v696 = vpop.f32.mrb[0].mxu0
  %v697 = vadd.f32 0.0, %v696
  %v698 = vpop.f32.mrb[0].mxu0
  %v699 = vadd.f32 0.0, %v698
  %700 = vdwg.mxu0
  %701 = vmatprep.subr.mxu0 %v604
  %702 = vmatpush1.msra.mxu0 %v603
  %703 = vmatprep.subr.mxu0 %v610
  %704 = vmatpush1.msra.mxu0 %v609
  %705 = vmatprep.subr.mxu0 %v616
  %706 = vmatpush1.msra.mxu0 %v615
  %707 = vmatprep.subr.mxu0 %v622
  %708 = vmatpush1.msra.mxu0 %v621
  %709 = vmatprep.subr.mxu0 0.0
  %710 = vmatpush1.msra.mxu0 0.0
  %711 = vmatprep.subr.mxu0 0.0
  %712 = vmatpush1.msra.mxu0 0.0
  %713 = vmatprep.subr.mxu0 0.0
  %714 = vmatpush1.msra.mxu0 0.0
  %715 = vmatprep.subr.mxu0 0.0
  %716 = vmatpush1.msra.mxu0 0.0
  %717 = vmatprep.subr.mxu0 0.0
  %718 = vmatpush1.msra.mxu0 0.0
  %719 = vmatprep.subr.mxu0 0.0
  %720 = vmatpush1.msra.mxu0 0.0
  %721 = vmatprep.subr.mxu0 0.0
  %722 = vmatpush1.msra.mxu0 0.0
  %723 = vmatprep.subr.mxu0 0.0
  %724 = vmatpush1.msra.mxu0 0.0
  %725 = vmatprep.subr.mxu0 0.0
  %726 = vmatpush1.msra.mxu0 0.0
  %727 = vmatprep.subr.mxu0 0.0
  %728 = vmatpush1.msra.mxu0 0.0
  %729 = vmatprep.subr.mxu0 0.0
  %730 = vmatpush1.msra.mxu0 0.0
  %731 = vmatprep.subr.mxu0 0.0
  %732 = vmatpush1.msra.mxu0 0.0
  %733 = vmatprep.subr.mxu0 0.0
  %734 = vmatpush1.msra.mxu0 0.0
  %735 = vmatprep.subr.mxu0 0.0
  %736 = vmatpush1.msra.mxu0 0.0
  %737 = vmatprep.subr.mxu0 0.0
  %738 = vmatpush1.msra.mxu0 0.0
  %739 = vmatprep.subr.mxu0 0.0
  %740 = vmatpush1.msra.mxu0 0.0
  %741 = vmatprep.subr.mxu0 0.0
  %742 = vmatpush1.msra.mxu0 0.0
  %743 = vmatprep.subr.mxu0 0.0
  %744 = vmatpush1.msra.mxu0 0.0
  %745 = vmatprep.subr.mxu0 0.0
  %746 = vmatpush1.msra.mxu0 0.0
  %747 = vmatprep.subr.mxu0 0.0
  %748 = vmatpush1.msra.mxu0 0.0
  %749 = vmatprep.subr.mxu0 0.0
  %750 = vmatpush1.msra.mxu0 0.0
  %751 = vmatprep.subr.mxu0 0.0
  %752 = vmatpush1.msra.mxu0 0.0
  %753 = vmatprep.subr.mxu0 0.0
  %754 = vmatpush1.msra.mxu0 0.0
  %755 = vmatprep.subr.mxu0 0.0
  %756 = vmatpush1.msra.mxu0 0.0
  %757 = vmatprep.subr.mxu0 0.0
  %758 = vmatpush1.msra.mxu0 0.0
  %759 = vmatprep.subr.mxu0 0.0
  %760 = vmatpush1.msra.mxu0 0.0
  %761 = vmatprep.subr.mxu0 0.0
  %762 = vmatpush1.msra.mxu0 0.0
  %763 = vmatprep.subr.mxu0 0.0
  %764 = vmatpush1.msra.mxu0 0.0
  %765 = vmatprep.mubr.f32.mxu0 0.0
  %766 = vmatmul.mubr.f32.gmra.mrb[0].mxu0 %v628
  %v767 = vpop.f32.mrb[0].mxu0
  %v768 = vadd.f32 0.0, %v767
  %v769 = vpop.f32.mrb[0].mxu0
  %v770 = vadd.f32 0.0, %v769
  %771 = vdwg.mxu0
  %772 = vmatprep.subr.mxu0 %v606
  %773 = vmatpush1.msra.mxu0 %v605
  %774 = vmatprep.subr.mxu0 %v612
  %775 = vmatpush1.msra.mxu0 %v611
  %776 = vmatprep.subr.mxu0 %v618
  %777 = vmatpush1.msra.mxu0 %v617
  %778 = vmatprep.subr.mxu0 %v624
  %779 = vmatpush1.msra.mxu0 %v623
  %780 = vmatprep.subr.mxu0 0.0
  %781 = vmatpush1.msra.mxu0 0.0
  %782 = vmatprep.subr.mxu0 0.0
  %783 = vmatpush1.msra.mxu0 0.0
  %784 = vmatprep.subr.mxu0 0.0
  %785 = vmatpush1.msra.mxu0 0.0
  %786 = vmatprep.subr.mxu0 0.0
  %787 = vmatpush1.msra.mxu0 0.0
  %788 = vmatprep.subr.mxu0 0.0
  %789 = vmatpush1.msra.mxu0 0.0
  %790 = vmatprep.subr.mxu0 0.0
  %791 = vmatpush1.msra.mxu0 0.0
  %792 = vmatprep.subr.mxu0 0.0
  %793 = vmatpush1.msra.mxu0 0.0
  %794 = vmatprep.subr.mxu0 0.0
  %795 = vmatpush1.msra.mxu0 0.0
  %796 = vmatprep.subr.mxu0 0.0
  %797 = vmatpush1.msra.mxu0 0.0
  %798 = vmatprep.subr.mxu0 0.0
  %799 = vmatpush1.msra.mxu0 0.0
  %800 = vmatprep.subr.mxu0 0.0
  %801 = vmatpush1.msra.mxu0 0.0
  %802 = vmatprep.subr.mxu0 0.0
  %803 = vmatpush1.msra.mxu0 0.0
  %804 = vmatprep.subr.mxu0 0.0
  %805 = vmatpush1.msra.mxu0 0.0
  %806 = vmatprep.subr.mxu0 0.0
  %807 = vmatpush1.msra.mxu0 0.0
  %808 = vmatprep.subr.mxu0 0.0
  %809 = vmatpush1.msra.mxu0 0.0
  %810 = vmatprep.subr.mxu0 0.0
  %811 = vmatpush1.msra.mxu0 0.0
  %812 = vmatprep.subr.mxu0 0.0
  %813 = vmatpush1.msra.mxu0 0.0
  %814 = vmatprep.subr.mxu0 0.0
  %815 = vmatpush1.msra.mxu0 0.0
  %816 = vmatprep.subr.mxu0 0.0
  %817 = vmatpush1.msra.mxu0 0.0
  %818 = vmatprep.subr.mxu0 0.0
  %819 = vmatpush1.msra.mxu0 0.0
  %820 = vmatprep.subr.mxu0 0.0
  %821 = vmatpush1.msra.mxu0 0.0
  %822 = vmatprep.subr.mxu0 0.0
  %823 = vmatpush1.msra.mxu0 0.0
  %824 = vmatprep.subr.mxu0 0.0
  %825 = vmatpush1.msra.mxu0 0.0
  %826 = vmatprep.subr.mxu0 0.0
  %827 = vmatpush1.msra.mxu0 0.0
  %828 = vmatprep.subr.mxu0 0.0
  %829 = vmatpush1.msra.mxu0 0.0
  %830 = vmatprep.subr.mxu0 0.0
  %831 = vmatpush1.msra.mxu0 0.0
  %832 = vmatprep.subr.mxu0 0.0
  %833 = vmatpush1.msra.mxu0 0.0
  %834 = vmatprep.subr.mxu0 0.0
  %835 = vmatpush1.msra.mxu0 0.0
  %836 = vmatprep.mubr.f32.mxu0 0.0
  %837 = vmatmul.mubr.f32.gmra.mrb[0].mxu0 %v628
  %v838 = vpop.f32.mrb[0].mxu0
  %v839 = vadd.f32 0.0, %v838
  %v840 = vpop.f32.mrb[0].mxu0
  %v841 = vadd.f32 0.0, %v840
  %842 = vdwg.mxu0
  %v845 = vcombine.low %v697, %v699
  %847 = vst [vmem:[%s4] sm:$0xff] %v845
  %848 = vst [vmem:[%s4 + $0x8] sm:$0xf] %v768
  %v851 = vcombine.low %v770, %v839
  %s853 = scalar_lea.vmem %s4, 12
  %854 = vst [vmem:[%s853] sm:$0xff] %v851
  %855 = vst [vmem:[%s853 + $0x8] sm:$0xf] %v841
  // Predicated region
  $region18: #{conv_ode_func_forward.1} parent=0 // pred_check
    _
  $region19: #{conv_ode_func_forward.1} parent=0 // pred_check_branch
    %857 = sbr.rel (0) target = $region21
  $region20: #{conv_ode_func_forward.1} parent=0 // pred_region
    _
  $region21: #{conv_ode_func_forward.1} parent=0 // pred_fallthru
    _
  // Predicated region
  $region22: #{conv_ode_func_forward.1} parent=0 // pred_check
    _
  $region23: #{conv_ode_func_forward.1} parent=0 // pred_check_branch
    %859 = sbr.rel (0) target = $region25
  $region24: #{conv_ode_func_forward.1} parent=0 // pred_region
    _
  $region25: #{conv_ode_func_forward.1} parent=0 // pred_fallthru
    _

</llo_original>
